<compile_context>
chip_gen: v7x
topology: tpu7x:2x2x1
jax: 0.10.0
libtpu: 0.0.40
codegen_flags: <defaults>
</compile_context>

<pallas_src>
import functools

import jax
import jax.numpy as jnp
import numpy as np
from jax.experimental import pallas as pl
from jax.experimental.pallas import tpu as pltpu

_LANE = 128


def _round_up(x, m):
    return ((x + m - 1) // m) * m


def _vmem_limit_bytes():
    """Per-generation scoped-VMEM budget: half of physical VMEM, capped at 96 MiB."""
    try:
        cap = pltpu.get_tpu_info().vmem_capacity_bytes
    except Exception:
        cap = 128 * 1024 * 1024
    return int(min(cap // 2, 96 * 1024 * 1024))


def _row_tile(n_pad):
    if n_pad % 512 == 0 and n_pad >= 1024:
        return 512
    if n_pad % 256 == 0:
        return 256
    return 128


def _col_tile(f_pad):
    if f_pad <= 512:
        return f_pad                      # single column block: A_hat streamed once
    for t in (512, 256, 128):
        if f_pad % t == 0:
            return t
    return _LANE


# ----------------------------------------------------------------------------
# Pallas kernels
# ----------------------------------------------------------------------------
def _matmul_kernel(x_ref, w_ref, o_ref):
    """o = x @ w; full-K block per (i, j) -> no scratch accumulator needed."""
    o_ref[...] = jnp.dot(x_ref[...], w_ref[...],
                         preferred_element_type=jnp.float32).astype(o_ref.dtype)


def _aggregate_kernel(a_ref, h_ref, b_ref, o_ref, acc_ref, *, apply_relu):
    """o = relu?(a @ h + b); bf16 MXU inputs, f32 VMEM accumulator over the k axis."""
    @pl.when(pl.program_id(2) == 0)
    def _():
        acc_ref[...] = jnp.zeros_like(acc_ref)

    acc_ref[...] += jnp.dot(a_ref[...], h_ref[...],
                            preferred_element_type=jnp.float32)

    @pl.when(pl.program_id(2) == pl.num_programs(2) - 1)
    def _():
        y = acc_ref[...] + b_ref[...]
        if apply_relu:
            y = jnp.maximum(y, 0.0)
        o_ref[...] = y.astype(o_ref.dtype)


def _pool_linear_kernel(p_ref, h_ref, w_ref, b_ref, o_ref, acc_ref):
    """out = (P @ H) @ W + b, reduced over node tiles (grid axis 0)."""
    @pl.when(pl.program_id(0) == 0)
    def _():
        acc_ref[...] = jnp.zeros_like(acc_ref)

    acc_ref[...] += jnp.dot(p_ref[...], h_ref[...],
                            preferred_element_type=jnp.float32)

    @pl.when(pl.program_id(0) == pl.num_programs(0) - 1)
    def _():
        o_ref[...] = (jnp.dot(acc_ref[...], w_ref[...],
                              preferred_element_type=jnp.float32)
                      + b_ref[...]).astype(o_ref.dtype)


def _fused_forward_kernel(*refs, layers):
    """Whole forward in one call: conv1[..conv3] + mean-pool + Linear, A_hat resident."""
    if layers == 3:
        (x_ref, a_ref, w1_ref, b1_ref, w2_ref, b2_ref, w3_ref, b3_ref,
         wl_ref, bl_ref, p_ref, o_ref) = refs
    else:
        x_ref, a_ref, w1_ref, b1_ref, wl_ref, bl_ref, p_ref, o_ref = refs

    a = a_ref[...]  # (n_pad, n_pad) bf16, stays in VMEM for every layer

    def conv(h_in_bf16, w_ref, b_ref, relu):
        xw = jnp.dot(h_in_bf16, w_ref[...], preferred_element_type=jnp.float32)
        y = jnp.dot(a, xw.astype(jnp.bfloat16),
                    preferred_element_type=jnp.float32) + b_ref[...]
        if relu:
            y = jnp.maximum(y, 0.0)
        return y

    h = conv(x_ref[...], w1_ref, b1_ref, True)
    if layers == 3:
        h = conv(h.astype(jnp.bfloat16), w2_ref, b2_ref, True)
        h = conv(h.astype(jnp.bfloat16), w3_ref, b3_ref, False)

    pooled = jnp.dot(p_ref[...], h, preferred_element_type=jnp.float32)
    o_ref[...] = (jnp.dot(pooled, wl_ref[...],
                          preferred_element_type=jnp.float32)
                  + bl_ref[...]).astype(o_ref.dtype)


# ----------------------------------------------------------------------------
# Pallas wrappers
# ----------------------------------------------------------------------------
def tiled_matmul(x, w, *, out_dtype, vmem_limit):
    """X @ W with grid (M/tm, N/tn); K is taken as one block (small padded feature dim)."""
    m, k = x.shape
    _, n = w.shape
    tm = _row_tile(m)
    tn = _col_tile(n)
    grid = (m // tm, n // tn)
    out_bytes = m * n * (2 if out_dtype == jnp.bfloat16 else 4)
    bytes_accessed = x.size * x.dtype.itemsize + w.size * w.dtype.itemsize + out_bytes
    return pl.pallas_call(
        _matmul_kernel,
        out_shape=jax.ShapeDtypeStruct((m, n), out_dtype),
        grid_spec=pltpu.PrefetchScalarGridSpec(
            num_scalar_prefetch=0,
            grid=grid,
            in_specs=[pl.BlockSpec((tm, k), lambda i, j: (i, 0)),
                      pl.BlockSpec((k, tn), lambda i, j: (0, j))],
            out_specs=pl.BlockSpec((tm, tn), lambda i, j: (i, j))),
        compiler_params=pltpu.CompilerParams(
            dimension_semantics=("parallel", "parallel"),
            vmem_limit_bytes=vmem_limit),
        cost_estimate=pl.CostEstimate(flops=2 * m * k * n, transcendentals=0,
                                      bytes_accessed=bytes_accessed),
    )(x, w)


def gcn_aggregate(a_hat_bf16, xw_bf16, b, *, apply_relu, out_dtype, vmem_limit):
    """relu?(A_hat @ XW + b). tn = f_pad (<=512) so A_hat streams from HBM once."""
    n = a_hat_bf16.shape[0]
    f = xw_bf16.shape[1]
    tm = _row_tile(n)
    tk = tm
    tn = _col_tile(f)
    grid = (n // tm, f // tn, n // tk)
    kernel = functools.partial(_aggregate_kernel, apply_relu=apply_relu)
    out_bytes = n * f * (2 if out_dtype == jnp.bfloat16 else 4)
    bytes_accessed = (f // tn) * n * n * 2 + (n // tm) * n * f * 2 + out_bytes
    return pl.pallas_call(
        kernel,
        out_shape=jax.ShapeDtypeStruct((n, f), out_dtype),
        grid_spec=pltpu.PrefetchScalarGridSpec(
            num_scalar_prefetch=0,
            grid=grid,
            in_specs=[pl.BlockSpec((tm, tk), lambda i, j, k: (i, k)),
                      pl.BlockSpec((tk, tn), lambda i, j, k: (k, j)),
                      pl.BlockSpec((1, tn), lambda i, j, k: (0, j))],
            out_specs=pl.BlockSpec((tm, tn), lambda i, j, k: (i, j)),
            scratch_shapes=[pltpu.VMEM((tm, tn), jnp.float32)]),
        compiler_params=pltpu.CompilerParams(
            dimension_semantics=("parallel", "parallel", "arbitrary"),
            vmem_limit_bytes=vmem_limit),
        cost_estimate=pl.CostEstimate(flops=2 * n * n * f, transcendentals=0,
                                      bytes_accessed=bytes_accessed),
    )(a_hat_bf16, xw_bf16, b)


def pool_linear(pool_mat, h, w, b, *, vmem_limit):
    """(P @ H) @ W + b, reduced over node tiles (H streamed once)."""
    g, n = pool_mat.shape
    f = h.shape[1]
    o = w.shape[1]
    tk = _row_tile(n)
    grid = (n // tk,)
    return pl.pallas_call(
        _pool_linear_kernel,
        out_shape=jax.ShapeDtypeStruct((g, o), jnp.float32),
        grid_spec=pltpu.PrefetchScalarGridSpec(
            num_scalar_prefetch=0,
            grid=grid,
            in_specs=[pl.BlockSpec((g, tk), lambda k: (0, k)),
                      pl.BlockSpec((tk, f), lambda k: (k, 0)),
                      pl.BlockSpec((f, o), lambda k: (0, 0)),
                      pl.BlockSpec((1, o), lambda k: (0, 0))],
            out_specs=pl.BlockSpec((g, o), lambda k: (0, 0)),
            scratch_shapes=[pltpu.VMEM((g, f), jnp.float32)]),
        compiler_params=pltpu.CompilerParams(
            dimension_semantics=("arbitrary",),
            vmem_limit_bytes=vmem_limit),
    )(pool_mat, h, w, b)


def fused_forward(x_p, a_p, pool_p, pp, *, layers, out_pad, vmem_limit):
    g = pool_p.shape[0]
    kernel = functools.partial(_fused_forward_kernel, layers=layers)
    if layers == 3:
        args = (x_p, a_p, pp["w1"], pp["b1"], pp["w2"], pp["b2"],
                pp["w3"], pp["b3"], pp["wl"], pp["bl"], pool_p)
    else:
        args = (x_p, a_p, pp["w1"], pp["b1"], pp["wl"], pp["bl"], pool_p)
    return pl.pallas_call(
        kernel,
        out_shape=jax.ShapeDtypeStruct((g, out_pad), jnp.float32),
        in_specs=[pl.BlockSpec(memory_space=pltpu.MemorySpace.VMEM) for _ in args],
        out_specs=pl.BlockSpec(memory_space=pltpu.MemorySpace.VMEM),
        compiler_params=pltpu.CompilerParams(vmem_limit_bytes=vmem_limit),
    )(*args)


# ----------------------------------------------------------------------------
# Plain-JAX glue: normalized adjacency, pooling matrix, parameters, padding
# ----------------------------------------------------------------------------
def gcn_normalized_adj_bf16(edge_index, num_nodes):
    """Dense D^-1/2 (A + I) D^-1/2 matching PyG gcn_norm, emitted directly in bf16.
    TODO(synk): for very large N, avoid the dense f32 scatter intermediate and apply
    the D^-1/2 scaling on-chip inside the aggregation kernel instead."""
    src = edge_index[0]
    dst = edge_index[1]
    adj = jnp.zeros((num_nodes, num_nodes), jnp.float32)
    adj = adj.at[dst, src].add(1.0)          # messages flow src -> dst (row = target)
    adj = adj + jnp.eye(num_nodes, dtype=jnp.float32)
    deg = adj.sum(axis=1)
    dinv = jnp.where(deg > 0, jax.lax.rsqrt(deg), 0.0)
    return (dinv[:, None] * adj * dinv[None, :]).astype(jnp.bfloat16)


def mean_pool_matrix(batch, num_graphs):
    onehot = (batch[None, :] == jnp.arange(num_graphs)[:, None]).astype(jnp.float32)
    counts = onehot.sum(axis=1, keepdims=True)
    return onehot / jnp.maximum(counts, 1.0)


def init_params(key, feature_dim, hidden_channels, output_dimension):
    ks = jax.random.split(key, 4)

    def glorot(k, fan_in, fan_out):
        lim = (6.0 / (fan_in + fan_out)) ** 0.5
        return jax.random.uniform(k, (fan_in, fan_out), jnp.float32, -lim, lim)

    return {
        "w1": glorot(ks[0], feature_dim, hidden_channels),
        "b1": jnp.zeros((1, hidden_channels), jnp.float32),
        "w2": glorot(ks[1], hidden_channels, hidden_channels),
        "b2": jnp.zeros((1, hidden_channels), jnp.float32),
        "w3": glorot(ks[2], hidden_channels, hidden_channels),
        "b3": jnp.zeros((1, hidden_channels), jnp.float32),
        "wl": glorot(ks[3], hidden_channels, output_dimension),
        "bl": jnp.zeros((1, output_dimension), jnp.float32),
    }


def _pad2(a, rows, cols, dtype):
    return jnp.zeros((rows, cols), dtype).at[:a.shape[0], :a.shape[1]].set(
        a.astype(dtype))


def gcn_forward(params, x, edge_index, batch, num_graphs, layers=1,
                force_tiled=False):
    x = x.reshape(-1, x.shape[-1]).astype(jnp.float32)
    n, f_in = x.shape
    hidden = params["w1"].shape[1]
    out_dim = params["wl"].shape[1]

    fin_pad = _round_up(f_in, _LANE)
    hid_pad = _round_up(hidden, _LANE)
    out_pad = _round_up(out_dim, _LANE)
    vmem_limit = _vmem_limit_bytes()

    a_hat = gcn_normalized_adj_bf16(edge_index, n)        # (n, n) bf16
    pool = mean_pool_matrix(batch, num_graphs)            # (G, n) f32

    # Fully-fused single-call path when A_hat (+ activations) comfortably fits VMEM.
    n_pad_fused = _round_up(n, _LANE)
    fused_bytes = (2 * n_pad_fused * n_pad_fused          # A_hat bf16
                   + 2 * n_pad_fused * fin_pad            # X bf16
                   + 8 * n_pad_fused * hid_pad)           # a couple of f32 H temps
    use_fused = (not force_tiled) and (2 * fused_bytes <= vmem_limit)

    n_pad = n_pad_fused if use_fused else _round_up(n, 256)  # 256 rows feed 2x256^2 MXU

    # Padded node rows of H end up as relu(bias) != 0; they are masked out only by the
    # zero *columns* of A_hat / pooling matrix (see NOTE at top of file).
    x_p = _pad2(x, n_pad, fin_pad, jnp.bfloat16)
    a_p = _pad2(a_hat, n_pad, n_pad, jnp.bfloat16)
    pool_p = _pad2(pool, num_graphs, n_pad, jnp.float32)

    w1 = _pad2(params["w1"], fin_pad, hid_pad, jnp.bfloat16)
    w2 = _pad2(params["w2"], hid_pad, hid_pad, jnp.bfloat16)
    w3 = _pad2(params["w3"], hid_pad, hid_pad, jnp.bfloat16)
    b1 = _pad2(params["b1"], 1, hid_pad, jnp.float32)
    b2 = _pad2(params["b2"], 1, hid_pad, jnp.float32)
    b3 = _pad2(params["b3"], 1, hid_pad, jnp.float32)
    wl = _pad2(params["wl"], hid_pad, out_pad, jnp.float32)
    bl = _pad2(params["bl"], 1, out_pad, jnp.float32)

    # TODO(synk): F.dropout(p=0.5) is identity in eval mode; training RNG dropout not replicated.
    if use_fused:
        pp = dict(w1=w1, b1=b1, w2=w2, b2=b2, w3=w3, b3=b3, wl=wl, bl=bl)
        out = fused_forward(x_p, a_p, pool_p, pp, layers=layers,
                            out_pad=out_pad, vmem_limit=vmem_limit)
        return out[:, :out_dim]

    # Tiled 2-pass path: XW = X @ W (single-K pass), H = relu?(A_hat @ XW + b)
    # with tn = f_pad so A_hat streams from HBM exactly once per layer.
    xw = tiled_matmul(x_p, w1, out_dtype=jnp.bfloat16, vmem_limit=vmem_limit)
    h = gcn_aggregate(a_p, xw, b1, apply_relu=True,
                      out_dtype=(jnp.bfloat16 if layers == 3 else jnp.float32),
                      vmem_limit=vmem_limit)
    if layers == 3:
        xw = tiled_matmul(h, w2, out_dtype=jnp.bfloat16, vmem_limit=vmem_limit)
        h = gcn_aggregate(a_p, xw, b2, apply_relu=True,
                          out_dtype=jnp.bfloat16, vmem_limit=vmem_limit)
        xw = tiled_matmul(h, w3, out_dtype=jnp.bfloat16, vmem_limit=vmem_limit)
        h = gcn_aggregate(a_p, xw, b3, apply_relu=False,
                          out_dtype=jnp.float32, vmem_limit=vmem_limit)

    out = pool_linear(pool_p, h, wl, bl, vmem_limit=vmem_limit)
    return out[:, :out_dim]


def gcn_forward_ref(params, x, edge_index, batch, num_graphs, layers=1):
    """Pure-JAX f32 reference (same math, no padding / bf16)."""
    x = x.reshape(-1, x.shape[-1]).astype(jnp.float32)
    n = x.shape[0]
    a = gcn_normalized_adj_bf16(edge_index, n).astype(jnp.float32)
    h = jnp.maximum(a @ (x @ params["w1"]) + params["b1"], 0.0)
    if layers == 3:
        h = jnp.maximum(a @ (h @ params["w2"]) + params["b2"], 0.0)
        h = a @ (h @ params["w3"]) + params["b3"]
    p = mean_pool_matrix(batch, num_graphs)
    return (p @ h) @ params["wl"] + params["bl"]


# ----------------------------------------------------------------------------
if __name__ == "__main__":
    key = jax.random.PRNGKey(0)
    k_x, k_p = jax.random.split(key)

    num_nodes = 16
    feature_dim = 8
    hidden_channels = 32
    output_dimension = 4
    num_graphs = 2

    # Two small graphs: nodes 0..7 -> graph 0, nodes 8..15 -> graph 1 (ring edges).
    x = jax.random.normal(k_x, (num_nodes, feature_dim), jnp.float32)
    ring0_src = jnp.arange(8)
    ring0_dst = (ring0_src + 1) % 8
    ring1_src = jnp.arange(8) + 8
    ring1_dst = (jnp.arange(8) + 1) % 8 + 8
    src = jnp.concatenate([ring0_src, ring0_dst, ring1_src, ring1_dst])
    dst = jnp.concatenate([ring0_dst, ring0_src, ring1_dst, ring1_src])
    edge_index = jnp.stack([src, dst]).astype(jnp.int32)        # (2, 32)
    batch = jnp.concatenate([jnp.zeros(8, jnp.int32), jnp.ones(8, jnp.int32)])

    params = init_params(k_p, feature_dim, hidden_channels, output_dimension)

    fwd = jax.jit(gcn_forward,
                  static_argnames=("num_graphs", "layers", "force_tiled"))

    for layers in (1, 3):
        ref = gcn_forward_ref(params, x, edge_index, batch, num_graphs,
                              layers=layers)
        for force_tiled in (False, True):   # exercise both fused & tiled kernels
            out = fwd(params, x, edge_index, batch, num_graphs=num_graphs,
                      layers=layers, force_tiled=force_tiled)
            jax.block_until_ready(out)
            assert out.shape == (num_graphs, output_dimension)
            np.testing.assert_allclose(np.asarray(out), np.asarray(ref),
                                       rtol=5e-2, atol=5e-2)

    print("KERNEL_OK")
</pallas_src>

<mosaic_0001>
module attributes {stable_mosaic.version = 11 : i64} {
  func.func private @main(%arg0: i32) attributes {dimension_semantics = [#tpu.dimension_semantics<core_parallel>], iteration_bounds = array<i64: 2>, tpu.core_type = #tpu.core_type<sc_scalar_subcore>, window_params = []} {
    return
  }
}

module attributes {stable_mosaic.version = 11 : i64} {
  func.func private @main(%arg0: i32) attributes {dimension_semantics = [#tpu.dimension_semantics<core_parallel>], iteration_bounds = array<i64: 2>, tpu.core_type = #tpu.core_type<sc_scalar_subcore>, window_params = []} {
    return
  }
}

module attributes {stable_mosaic.version = 11 : i64} {
  func.func @_fused_forward_kernel(%arg0: memref<128x128xbf16, #tpu.memory_space<vmem>>, %arg1: memref<128x128xbf16, #tpu.memory_space<vmem>>, %arg2: memref<128x128xbf16, #tpu.memory_space<vmem>>, %arg3: memref<1x128xf32, #tpu.memory_space<vmem>>, %arg4: memref<128x128xf32, #tpu.memory_space<vmem>>, %arg5: memref<1x128xf32, #tpu.memory_space<vmem>>, %arg6: memref<2x128xf32, #tpu.memory_space<vmem>>, %arg7: memref<2x128xf32, #tpu.memory_space<vmem>>) attributes {dimension_semantics = [], scalar_prefetch = 0 : i64, scratch_operands = 0 : i64, tpu.core_type = #tpu.core_type<tc>} {
    %c0 = arith.constant 0 : index
    %c0_0 = arith.constant 0 : index
    %0 = vector.load %arg1[%c0, %c0_0] : memref<128x128xbf16, #tpu.memory_space<vmem>>, vector<128x128xbf16>
    %c0_1 = arith.constant 0 : index
    %c0_2 = arith.constant 0 : index
    %1 = vector.load %arg0[%c0_1, %c0_2] : memref<128x128xbf16, #tpu.memory_space<vmem>>, vector<128x128xbf16>
    %c0_3 = arith.constant 0 : index
    %c0_4 = arith.constant 0 : index
    %2 = vector.load %arg2[%c0_3, %c0_4] : memref<128x128xbf16, #tpu.memory_space<vmem>>, vector<128x128xbf16>
    %cst = arith.constant dense<0.000000e+00> : vector<128x128xf32>
    %3 = tpu.matmul %1, %2, %cst {dimension_numbers = #tpu.dot_dimension_numbers<[1], [0], [0], [1], [0, 0, 1, 1], [], []>} : vector<128x128xbf16>, vector<128x128xbf16>, vector<128x128xf32> -> vector<128x128xf32>
    %4 = arith.truncf %3 : vector<128x128xf32> to vector<128x128xbf16>
    %cst_5 = arith.constant dense<0.000000e+00> : vector<128x128xf32>
    %5 = tpu.matmul %0, %4, %cst_5 {dimension_numbers = #tpu.dot_dimension_numbers<[1], [0], [0], [1], [0, 0, 1, 1], [], []>} : vector<128x128xbf16>, vector<128x128xbf16>, vector<128x128xf32> -> vector<128x128xf32>
    %c0_6 = arith.constant 0 : index
    %c0_7 = arith.constant 0 : index
    %6 = vector.load %arg3[%c0_6, %c0_7] : memref<1x128xf32, #tpu.memory_space<vmem>>, vector<1x128xf32>
    %7 = vector.broadcast %6 : vector<1x128xf32> to vector<128x128xf32>
    %8 = arith.addf %5, %7 : vector<128x128xf32>
    %cst_8 = arith.constant 0.000000e+00 : f32
    %9 = vector.broadcast %cst_8 : f32 to vector<128x128xf32>
    %10 = arith.maximumf %8, %9 : vector<128x128xf32>
    %c0_9 = arith.constant 0 : index
    %c0_10 = arith.constant 0 : index
    %11 = vector.load %arg6[%c0_9, %c0_10] : memref<2x128xf32, #tpu.memory_space<vmem>>, vector<2x128xf32>
    %cst_11 = arith.constant dense<0.000000e+00> : vector<2x128xf32>
    %12 = tpu.matmul %11, %10, %cst_11 {dimension_numbers = #tpu.dot_dimension_numbers<[1], [0], [0], [1], [0, 0, 1, 1], [], []>} : vector<2x128xf32>, vector<128x128xf32>, vector<2x128xf32> -> vector<2x128xf32>
    %c0_12 = arith.constant 0 : index
    %c0_13 = arith.constant 0 : index
    %13 = vector.load %arg4[%c0_12, %c0_13] : memref<128x128xf32, #tpu.memory_space<vmem>>, vector<128x128xf32>
    %cst_14 = arith.constant dense<0.000000e+00> : vector<2x128xf32>
    %14 = tpu.matmul %12, %13, %cst_14 {dimension_numbers = #tpu.dot_dimension_numbers<[1], [0], [0], [1], [0, 0, 1, 1], [], []>} : vector<2x128xf32>, vector<128x128xf32>, vector<2x128xf32> -> vector<2x128xf32>
    %c0_15 = arith.constant 0 : index
    %c0_16 = arith.constant 0 : index
    %15 = vector.load %arg5[%c0_15, %c0_16] : memref<1x128xf32, #tpu.memory_space<vmem>>, vector<1x128xf32>
    %16 = vector.broadcast %15 : vector<1x128xf32> to vector<2x128xf32>
    %17 = arith.addf %14, %16 : vector<2x128xf32>
    %c0_17 = arith.constant 0 : index
    %c0_18 = arith.constant 0 : index
    %18 = vector.load %arg7[%c0_17, %c0_18] : memref<2x128xf32, #tpu.memory_space<vmem>>, vector<2x128xf32>
    tpu.vector_store %arg7[%c0_17, %c0_18], %17 {strides = array<i32>} : memref<2x128xf32, #tpu.memory_space<vmem>>, vector<2x128xf32>,
    return
  }
}

</mosaic_0001>

<llo_original>
// kernel: gcn_forward.1
$region0: #{gcn_forward.1}
  #allocation0 [shape = 'u32[]', space=smem, size = 0x4, offset = 0x4, fixed_abs, tag = 'smem constant byte address 0x4 - core index']
  #allocation1 [shape = 'u32[144,128]{1,0:T(1,128)}', space=vmem, size = 0x12000, scoped, tag = 'internal scratch']
  %s0 = inlined_call_operand.hbm [shape: bf16[128,128], index: 0, kind: input, shape index: {}]
  %s1 = inlined_call_operand.hbm [shape: bf16[128,128], index: 1, kind: input, shape index: {}]
  %s2 = inlined_call_operand.hbm [shape: bf16[128,128], index: 2, kind: input, shape index: {}]
  %s3 = inlined_call_operand.hbm [shape: f32[1,128], index: 3, kind: input, shape index: {}]
  %s4 = inlined_call_operand.hbm [shape: f32[128,128], index: 4, kind: input, shape index: {}]
  %s5 = inlined_call_operand.hbm [shape: f32[1,128], index: 5, kind: input, shape index: {}]
  %s6 = inlined_call_operand.hbm [shape: f32[2,128], index: 6, kind: input, shape index: {}]
  %s7 = inlined_call_operand.hbm [shape: f32[2,128], index: 7, kind: output, shape index: {}]
  %s8 = sld [smem:[#allocation0]]
  $region66: #{gcn_forward.1} parent=0
    _
  %s10 = ssub.s32 1, %s8
  %s11 = scalar_select 0, %s10, %s8
  $region1: #{gcn_forward.1} parent=0
    #allocation2 [shape = 'u8[32768]{0}', space=vmem, size = 0x8000, scoped, tag = 'input window, operand 0, single buffered']
    #allocation3 [shape = 's32[1]{0}', space=sflag, size = 0x4, scoped, tag = 'scoped memory for gcn_forward.1']
    #allocation4 [shape = 's32[1]{0}', space=sflag, size = 0x4, scoped, tag = 'scoped memory for gcn_forward.1']
    #allocation5 [shape = 'u8[32768]{0}', space=vmem, size = 0x8000, scoped, tag = 'input window, operand 1, single buffered']
    #allocation6 [shape = 's32[1]{0}', space=sflag, size = 0x4, scoped, tag = 'scoped memory for gcn_forward.1']
    #allocation7 [shape = 'u8[32768]{0}', space=vmem, size = 0x8000, scoped, tag = 'input window, operand 2, single buffered']
    #allocation8 [shape = 'u8[512]{0}', space=vmem, size = 0x400, scoped, tag = 'input window, operand 3, single buffered']
    #allocation9 [shape = 's32[1]{0}', space=sflag, size = 0x4, scoped, tag = 'scoped memory for gcn_forward.1']
    #allocation10 [shape = 'u8[65536]{0}', space=vmem, size = 0x10000, scoped, tag = 'input window, operand 4, single buffered']
    #allocation11 [shape = 'u8[512]{0}', space=vmem, size = 0x400, scoped, tag = 'input window, operand 5, single buffered']
    #allocation12 [shape = 's32[1]{0}', space=sflag, size = 0x4, scoped, tag = 'scoped memory for gcn_forward.1']
    #allocation13 [shape = 'u8[1024]{0}', space=vmem, size = 0x400, scoped, tag = 'input window, operand 6, single buffered']
    #allocation14 [shape = 'u8[1024]{0}', space=vmem, size = 0x400, scoped, tag = 'output window, operand 0, single buffered']
    %12 = vsyncpa [#allocation3], 0
    %13 = vsyncpa [#allocation6], 0
    %14 = vsyncpa [#allocation9], 0
    %15 = vsyncpa [#allocation12], 0
    %16 = vsyncpa [#allocation4], 0
    // Predicated region
    $region2: #{gcn_forward.1} parent=1 // pred_check
      _
    $region3: #{gcn_forward.1} parent=1 // pred_check_branch
      %18 = sbr.rel (0) target = $region5
    $region4: #{gcn_forward.1} parent=1 // pred_region
      %s20 = ssub.s32 1024, 1024
      %21 = vsyncadd [#allocation3], %s20
      %s22 = sshll.u32 [#allocation2], 4
      %s23 = int_to_ptr.vmem [resolvable:$true] %s22
      %28 = dma.hbm_to_vmem [thread:$0]  %s0, 1024, %s23, [#allocation3], 64, 64, 4
    $region5: #{gcn_forward.1} parent=1 // pred_fallthru
      _
    // Predicated region
    $region6: #{gcn_forward.1} parent=1 // pred_check
      _
    $region7: #{gcn_forward.1} parent=1 // pred_check_branch
      %30 = sbr.rel (0) target = $region9
    $region8: #{gcn_forward.1} parent=1 // pred_region
      %s32 = ssub.s32 1024, 1024
      %33 = vsyncadd [#allocation6], %s32
      %s34 = sshll.u32 [#allocation5], 4
      %s35 = int_to_ptr.vmem [resolvable:$true] %s34
      %40 = dma.hbm_to_vmem [thread:$0]  %s1, 1024, %s35, [#allocation6], 64, 64, 4
    $region9: #{gcn_forward.1} parent=1 // pred_fallthru
      _
    // Predicated region
    $region10: #{gcn_forward.1} parent=1 // pred_check
      _
    $region11: #{gcn_forward.1} parent=1 // pred_check_branch
      %42 = sbr.rel (0) target = $region13
    $region12: #{gcn_forward.1} parent=1 // pred_region
      %s44 = ssub.s32 1024, 1024
      %45 = vsyncadd [#allocation6], %s44
      %s46 = sshll.u32 [#allocation7], 4
      %s47 = int_to_ptr.vmem [resolvable:$true] %s46
      %52 = dma.hbm_to_vmem [thread:$0]  %s2, 1024, %s47, [#allocation6], 64, 64, 4
    $region13: #{gcn_forward.1} parent=1 // pred_fallthru
      _
    // Predicated region
    $region14: #{gcn_forward.1} parent=1 // pred_check
      _
    $region15: #{gcn_forward.1} parent=1 // pred_check_branch
      %54 = sbr.rel (0) target = $region17
    $region16: #{gcn_forward.1} parent=1 // pred_region
      %s56 = ssub.s32 16, 16
      %57 = vsyncadd [#allocation9], %s56
      %s59 = sshll.u32 [#allocation8], 4
      %s60 = int_to_ptr.vmem [resolvable:$true] %s59
      %62 = dma.hbm_to_vmem [thread:$0]  %s3, 16, %s60, [#allocation9]
    $region17: #{gcn_forward.1} parent=1 // pred_fallthru
      _
    // Predicated region
    $region18: #{gcn_forward.1} parent=1 // pred_check
      _
    $region19: #{gcn_forward.1} parent=1 // pred_check_branch
      %64 = sbr.rel (0) target = $region21
    $region20: #{gcn_forward.1} parent=1 // pred_region
      %s66 = ssub.s32 2048, 2048
      %67 = vsyncadd [#allocation9], %s66
      %s68 = sshll.u32 [#allocation10], 4
      %s69 = int_to_ptr.vmem [resolvable:$true] %s68
      %74 = dma.hbm_to_vmem [thread:$0]  %s4, 2048, %s69, [#allocation9], 128, 128, 8
    $region21: #{gcn_forward.1} parent=1 // pred_fallthru
      _
    // Predicated region
    $region22: #{gcn_forward.1} parent=1 // pred_check
      _
    $region23: #{gcn_forward.1} parent=1 // pred_check_branch
      %76 = sbr.rel (0) target = $region25
    $region24: #{gcn_forward.1} parent=1 // pred_region
      %s78 = ssub.s32 16, 16
      %79 = vsyncadd [#allocation12], %s78
      %s81 = sshll.u32 [#allocation11], 4
      %s82 = int_to_ptr.vmem [resolvable:$true] %s81
      %84 = dma.hbm_to_vmem [thread:$0]  %s5, 16, %s82, [#allocation12]
    $region25: #{gcn_forward.1} parent=1 // pred_fallthru
      _
    // Predicated region
    $region26: #{gcn_forward.1} parent=1 // pred_check
      _
    $region27: #{gcn_forward.1} parent=1 // pred_check_branch
      %86 = sbr.rel (0) target = $region29
    $region28: #{gcn_forward.1} parent=1 // pred_region
      %s88 = ssub.s32 32, 32
      %89 = vsyncadd [#allocation12], %s88
      %s91 = sshll.u32 [#allocation13], 4
      %s92 = int_to_ptr.vmem [resolvable:$true] %s91
      %94 = dma.hbm_to_vmem [thread:$0]  %s6, 32, %s92, [#allocation12]
    $region29: #{gcn_forward.1} parent=1 // pred_fallthru
      _
    // Predicated region
    $region30: #{gcn_forward.1} parent=1 // pred_check
      _
    $region31: #{gcn_forward.1} parent=1 // pred_check_branch
      %96 = sbr.rel (0) target = $region33
    $region32: #{gcn_forward.1} parent=1 // pred_region
      %97 = dma.done [#allocation3], 1024
    $region33: #{gcn_forward.1} parent=1 // pred_fallthru
      _
    // Predicated region
    $region34: #{gcn_forward.1} parent=1 // pred_check
      _
    $region35: #{gcn_forward.1} parent=1 // pred_check_branch
      %99 = sbr.rel (0) target = $region37
    $region36: #{gcn_forward.1} parent=1 // pred_region
      %100 = dma.done [#allocation6], 1024
    $region37: #{gcn_forward.1} parent=1 // pred_fallthru
      _
    // Predicated region
    $region38: #{gcn_forward.1} parent=1 // pred_check
      _
    $region39: #{gcn_forward.1} parent=1 // pred_check_branch
      %102 = sbr.rel (0) target = $region41
    $region40: #{gcn_forward.1} parent=1 // pred_region
      %103 = dma.done [#allocation6], 1024
    $region41: #{gcn_forward.1} parent=1 // pred_fallthru
      _
    // Predicated region
    $region42: #{gcn_forward.1} parent=1 // pred_check
      _
    $region43: #{gcn_forward.1} parent=1 // pred_check_branch
      %105 = sbr.rel (0) target = $region45
    $region44: #{gcn_forward.1} parent=1 // pred_region
      %106 = dma.done [#allocation9], 16
    $region45: #{gcn_forward.1} parent=1 // pred_fallthru
      _
    // Predicated region
    $region46: #{gcn_forward.1} parent=1 // pred_check
      _
    $region47: #{gcn_forward.1} parent=1 // pred_check_branch
      %108 = sbr.rel (0) target = $region49
    $region48: #{gcn_forward.1} parent=1 // pred_region
      %109 = dma.done [#allocation9], 2048
    $region49: #{gcn_forward.1} parent=1 // pred_fallthru
      _
    // Predicated region
    $region50: #{gcn_forward.1} parent=1 // pred_check
      _
    $region51: #{gcn_forward.1} parent=1 // pred_check_branch
      %111 = sbr.rel (0) target = $region53
    $region52: #{gcn_forward.1} parent=1 // pred_region
      %112 = dma.done [#allocation12], 16
    $region53: #{gcn_forward.1} parent=1 // pred_fallthru
      _
    // Predicated region
    $region54: #{gcn_forward.1} parent=1 // pred_check
      _
    $region55: #{gcn_forward.1} parent=1 // pred_check_branch
      %114 = sbr.rel (0) target = $region57
    $region56: #{gcn_forward.1} parent=1 // pred_region
      %115 = dma.done [#allocation12], 32
    $region57: #{gcn_forward.1} parent=1 // pred_fallthru
      _
    %v117 = vld [vmem:[#allocation5] sm:$0xf]
    %v118 = vld [vmem:[#allocation5 + $0x4] sm:$0xf]
    %v119 = vld [vmem:[#allocation5 + $0x8] sm:$0xf]
    %v120 = vld [vmem:[#allocation5 + $0xc] sm:$0xf]
    %v121 = vld [vmem:[#allocation5 + $0x10] sm:$0xf]
    %v122 = vld [vmem:[#allocation5 + $0x14] sm:$0xf]
    %v123 = vld [vmem:[#allocation5 + $0x18] sm:$0xf]
    %v124 = vld [vmem:[#allocation5 + $0x1c] sm:$0xf]
    %v125 = vld [vmem:[#allocation5 + $0x20] sm:$0xf]
    %v126 = vld [vmem:[#allocation5 + $0x24] sm:$0xf]
    %v127 = vld [vmem:[#allocation5 + $0x28] sm:$0xf]
    %v128 = vld [vmem:[#allocation5 + $0x2c] sm:$0xf]
    %v129 = vld [vmem:[#allocation5 + $0x30] sm:$0xf]
    %v130 = vld [vmem:[#allocation5 + $0x34] sm:$0xf]
    %v131 = vld [vmem:[#allocation5 + $0x38] sm:$0xf]
    %v132 = vld [vmem:[#allocation5 + $0x3c] sm:$0xf]
    %v133 = vld [vmem:[#allocation2] sm:$0xf]
    %v134 = vld [vmem:[#allocation2 + $0x4] sm:$0xf]
    %v135 = vld [vmem:[#allocation2 + $0x8] sm:$0xf]
    %v136 = vld [vmem:[#allocation2 + $0xc] sm:$0xf]
    %v137 = vld [vmem:[#allocation2 + $0x10] sm:$0xf]
    %v138 = vld [vmem:[#allocation2 + $0x14] sm:$0xf]
    %v139 = vld [vmem:[#allocation2 + $0x18] sm:$0xf]
    %v140 = vld [vmem:[#allocation2 + $0x1c] sm:$0xf]
    %v141 = vld [vmem:[#allocation2 + $0x20] sm:$0xf]
    %v142 = vld [vmem:[#allocation2 + $0x24] sm:$0xf]
    %v143 = vld [vmem:[#allocation2 + $0x28] sm:$0xf]
    %v144 = vld [vmem:[#allocation2 + $0x2c] sm:$0xf]
    %v145 = vld [vmem:[#allocation2 + $0x30] sm:$0xf]
    %v146 = vld [vmem:[#allocation2 + $0x34] sm:$0xf]
    %v147 = vld [vmem:[#allocation2 + $0x38] sm:$0xf]
    %v148 = vld [vmem:[#allocation2 + $0x3c] sm:$0xf]
    %v149 = vld [vmem:[#allocation7] sm:$0xf]
    %v150 = vld [vmem:[#allocation7 + $0x4] sm:$0xf]
    %v151 = vld [vmem:[#allocation7 + $0x8] sm:$0xf]
    %v152 = vld [vmem:[#allocation7 + $0xc] sm:$0xf]
    %v153 = vld [vmem:[#allocation7 + $0x10] sm:$0xf]
    %v154 = vld [vmem:[#allocation7 + $0x14] sm:$0xf]
    %v155 = vld [vmem:[#allocation7 + $0x18] sm:$0xf]
    %v156 = vld [vmem:[#allocation7 + $0x1c] sm:$0xf]
    %v157 = vld [vmem:[#allocation7 + $0x20] sm:$0xf]
    %v158 = vld [vmem:[#allocation7 + $0x24] sm:$0xf]
    %v159 = vld [vmem:[#allocation7 + $0x28] sm:$0xf]
    %v160 = vld [vmem:[#allocation7 + $0x2c] sm:$0xf]
    %v161 = vld [vmem:[#allocation7 + $0x30] sm:$0xf]
    %v162 = vld [vmem:[#allocation7 + $0x34] sm:$0xf]
    %v163 = vld [vmem:[#allocation7 + $0x38] sm:$0xf]
    %v164 = vld [vmem:[#allocation7 + $0x3c] sm:$0xf]
    %v181 = vunpack.c.l.b16 %v133
    %v182 = vunpack.c.l.b16 %v134
    %v183 = vunpack.c.l.b16 %v135
    %v184 = vunpack.c.l.b16 %v136
    %v185 = vunpack.c.l.b16 %v137
    %v186 = vunpack.c.l.b16 %v138
    %v187 = vunpack.c.l.b16 %v139
    %v188 = vunpack.c.l.b16 %v140
    %v189 = vunpack.c.l.b16 %v141
    %v190 = vunpack.c.l.b16 %v142
    %v191 = vunpack.c.l.b16 %v143
    %v192 = vunpack.c.l.b16 %v144
    %v193 = vunpack.c.l.b16 %v145
    %v194 = vunpack.c.l.b16 %v146
    %v195 = vunpack.c.l.b16 %v147
    %v196 = vunpack.c.l.b16 %v148
    %v197 = vpack.c.b16 %v182, %v181
    %v198 = vpack.c.b16 %v184, %v183
    %v199 = vpack.c.b16 %v186, %v185
    %v200 = vpack.c.b16 %v188, %v187
    %v201 = vpack.c.b16 %v190, %v189
    %v202 = vpack.c.b16 %v192, %v191
    %v203 = vpack.c.b16 %v194, %v193
    %v204 = vpack.c.b16 %v196, %v195
    %v229 = vunpack.c.l.b16 %v149
    %v230 = vunpack.c.l.b16 %v150
    %v231 = vunpack.c.l.b16 %v151
    %v232 = vunpack.c.l.b16 %v152
    %v233 = vunpack.c.l.b16 %v153
    %v234 = vunpack.c.l.b16 %v154
    %v235 = vunpack.c.l.b16 %v155
    %v236 = vunpack.c.l.b16 %v156
    %v237 = vunpack.c.l.b16 %v157
    %v238 = vunpack.c.l.b16 %v158
    %v239 = vunpack.c.l.b16 %v159
    %v240 = vunpack.c.l.b16 %v160
    %v241 = vunpack.c.l.b16 %v161
    %v242 = vunpack.c.l.b16 %v162
    %v243 = vunpack.c.l.b16 %v163
    %v244 = vunpack.c.l.b16 %v164
    %v245 = vpack.c.b16 %v230, %v229
    %v246 = vpack.c.b16 %v232, %v231
    %v247 = vpack.c.b16 %v234, %v233
    %v248 = vpack.c.b16 %v236, %v235
    %v249 = vpack.c.b16 %v238, %v237
    %v250 = vpack.c.b16 %v240, %v239
    %v251 = vpack.c.b16 %v242, %v241
    %v252 = vpack.c.b16 %v244, %v243
    %261 = vmatprep.subr.bf16.mxu0 0
    %262 = vmatpush1.bf16.msra.mxu0 %v245
    %263 = vmatprep.subr.bf16.mxu0 0
    %264 = vmatpush1.bf16.msra.mxu0 %v246
    %265 = vmatprep.subr.bf16.mxu0 0
    %266 = vmatpush1.bf16.msra.mxu0 %v247
    %267 = vmatprep.subr.bf16.mxu0 0
    %268 = vmatpush1.bf16.msra.mxu0 %v248
    %269 = vmatprep.subr.bf16.mxu0 0
    %270 = vmatpush1.bf16.msra.mxu0 %v249
    %271 = vmatprep.subr.bf16.mxu0 0
    %272 = vmatpush1.bf16.msra.mxu0 %v250
    %273 = vmatprep.subr.bf16.mxu0 0
    %274 = vmatpush1.bf16.msra.mxu0 %v251
    %275 = vmatprep.subr.bf16.mxu0 0
    %276 = vmatpush1.bf16.msra.mxu0 %v252
    %277 = vmatprep.subr.bf16.mxu0 0
    %278 = vmatpush1.bf16.msra.mxu0 0
    %279 = vmatprep.subr.bf16.mxu0 0
    %280 = vmatpush1.bf16.msra.mxu0 0
    %281 = vmatprep.subr.bf16.mxu0 0
    %282 = vmatpush1.bf16.msra.mxu0 0
    %283 = vmatprep.subr.bf16.mxu0 0
    %284 = vmatpush1.bf16.msra.mxu0 0
    %285 = vmatprep.subr.bf16.mxu0 0
    %286 = vmatpush1.bf16.msra.mxu0 0
    %287 = vmatprep.subr.bf16.mxu0 0
    %288 = vmatpush1.bf16.msra.mxu0 0
    %289 = vmatprep.subr.bf16.mxu0 0
    %290 = vmatpush1.bf16.msra.mxu0 0
    %291 = vmatprep.subr.bf16.mxu0 0
    %292 = vmatpush1.bf16.msra.mxu0 0
    %293 = vmatprep.mubr.bf16.mxu0 0
    %294 = vmatmul.mubr.bf16.gmra.mrb[0].mxu0 %v197
    %v295 = vpop.f32.mrb[0].mxu0
    %v296 = vadd.f32 0.0, %v295
    %v297 = vpop.f32.mrb[0].mxu0
    %v298 = vpop.f32.mrb[0].mxu0
    %v299 = vadd.f32 0.0, %v298
    %v300 = vpop.f32.mrb[0].mxu0
    %301 = vmatprep.mubr.bf16.mxu0 0
    %302 = vmatmul.mubr.bf16.gmra.mrb[0].mxu0 %v198
    %v303 = vpop.f32.mrb[0].mxu0
    %v304 = vadd.f32 0.0, %v303
    %v305 = vpop.f32.mrb[0].mxu0
    %v306 = vpop.f32.mrb[0].mxu0
    %v307 = vadd.f32 0.0, %v306
    %v308 = vpop.f32.mrb[0].mxu0
    %309 = vmatprep.mubr.bf16.mxu0 0
    %310 = vmatmul.mubr.bf16.gmra.mrb[0].mxu0 %v199
    %v311 = vpop.f32.mrb[0].mxu0
    %v312 = vadd.f32 0.0, %v311
    %v313 = vpop.f32.mrb[0].mxu0
    %v314 = vpop.f32.mrb[0].mxu0
    %v315 = vadd.f32 0.0, %v314
    %v316 = vpop.f32.mrb[0].mxu0
    %317 = vmatprep.mubr.bf16.mxu0 0
    %318 = vmatmul.mubr.bf16.gmra.mrb[0].mxu0 %v200
    %v319 = vpop.f32.mrb[0].mxu0
    %v320 = vadd.f32 0.0, %v319
    %v321 = vpop.f32.mrb[0].mxu0
    %v322 = vpop.f32.mrb[0].mxu0
    %v323 = vadd.f32 0.0, %v322
    %v324 = vpop.f32.mrb[0].mxu0
    %325 = vmatprep.mubr.bf16.mxu0 0
    %326 = vmatmul.mubr.bf16.gmra.mrb[0].mxu0 %v201
    %v327 = vpop.f32.mrb[0].mxu0
    %v328 = vadd.f32 0.0, %v327
    %v329 = vpop.f32.mrb[0].mxu0
    %v330 = vpop.f32.mrb[0].mxu0
    %v331 = vadd.f32 0.0, %v330
    %v332 = vpop.f32.mrb[0].mxu0
    %333 = vmatprep.mubr.bf16.mxu0 0
    %334 = vmatmul.mubr.bf16.gmra.mrb[0].mxu0 %v202
    %v335 = vpop.f32.mrb[0].mxu0
    %v336 = vadd.f32 0.0, %v335
    %v337 = vpop.f32.mrb[0].mxu0
    %v338 = vpop.f32.mrb[0].mxu0
    %v339 = vadd.f32 0.0, %v338
    %v340 = vpop.f32.mrb[0].mxu0
    %341 = vmatprep.mubr.bf16.mxu0 0
    %342 = vmatmul.mubr.bf16.gmra.mrb[0].mxu0 %v203
    %v343 = vpop.f32.mrb[0].mxu0
    %v344 = vadd.f32 0.0, %v343
    %v345 = vpop.f32.mrb[0].mxu0
    %v346 = vpop.f32.mrb[0].mxu0
    %v347 = vadd.f32 0.0, %v346
    %v348 = vpop.f32.mrb[0].mxu0
    %349 = vmatprep.mubr.bf16.mxu0 0
    %350 = vmatmul.mubr.bf16.gmra.mrb[0].mxu0 %v204
    %v351 = vpop.f32.mrb[0].mxu0
    %v352 = vadd.f32 0.0, %v351
    %v353 = vpop.f32.mrb[0].mxu0
    %v354 = vpop.f32.mrb[0].mxu0
    %v355 = vadd.f32 0.0, %v354
    %v356 = vpop.f32.mrb[0].mxu0
    %357 = vdwg.mxu0
    %v358 = vpack.c.bf16 %v299, %v296
    %v359 = vpack.c.bf16 %v307, %v304
    %v360 = vpack.c.bf16 %v315, %v312
    %v361 = vpack.c.bf16 %v323, %v320
    %v362 = vpack.c.bf16 %v331, %v328
    %v363 = vpack.c.bf16 %v339, %v336
    %v364 = vpack.c.bf16 %v347, %v344
    %v365 = vpack.c.bf16 %v355, %v352
    %v366 = vld [vmem:[#allocation8] sm:$0x1]
    %v368 = vlaneseq
    %v369 = vshrl.u32 %v368, 7
    %v370 = vsub.s32 0, %v369
    %v371 = vrot.slane %v366, %v370
    %v389 = vunpack.c.l.b16 %v117
    %v390 = vunpack.c.l.b16 %v118
    %v391 = vunpack.c.l.b16 %v119
    %v392 = vunpack.c.l.b16 %v120
    %v393 = vunpack.c.l.b16 %v121
    %v394 = vunpack.c.l.b16 %v122
    %v395 = vunpack.c.l.b16 %v123
    %v396 = vunpack.c.l.b16 %v124
    %v397 = vunpack.c.l.b16 %v125
    %v398 = vunpack.c.l.b16 %v126
    %v399 = vunpack.c.l.b16 %v127
    %v400 = vunpack.c.l.b16 %v128
    %v401 = vunpack.c.l.b16 %v129
    %v402 = vunpack.c.l.b16 %v130
    %v403 = vunpack.c.l.b16 %v131
    %v404 = vunpack.c.l.b16 %v132
    %v405 = vpack.c.b16 %v390, %v389
    %v406 = vpack.c.b16 %v392, %v391
    %v407 = vpack.c.b16 %v394, %v393
    %v408 = vpack.c.b16 %v396, %v395
    %v409 = vpack.c.b16 %v398, %v397
    %v410 = vpack.c.b16 %v400, %v399
    %v411 = vpack.c.b16 %v402, %v401
    %v412 = vpack.c.b16 %v404, %v403
    %421 = vmatprep.subr.bf16.mxu0 0
    %422 = vmatpush1.bf16.msra.mxu0 %v358
    %423 = vmatprep.subr.bf16.mxu0 0
    %424 = vmatpush1.bf16.msra.mxu0 %v359
    %425 = vmatprep.subr.bf16.mxu0 0
    %426 = vmatpush1.bf16.msra.mxu0 %v360
    %427 = vmatprep.subr.bf16.mxu0 0
    %428 = vmatpush1.bf16.msra.mxu0 %v361
    %429 = vmatprep.subr.bf16.mxu0 0
    %430 = vmatpush1.bf16.msra.mxu0 %v362
    %431 = vmatprep.subr.bf16.mxu0 0
    %432 = vmatpush1.bf16.msra.mxu0 %v363
    %433 = vmatprep.subr.bf16.mxu0 0
    %434 = vmatpush1.bf16.msra.mxu0 %v364
    %435 = vmatprep.subr.bf16.mxu0 0
    %436 = vmatpush1.bf16.msra.mxu0 %v365
    %437 = vmatprep.subr.bf16.mxu0 0
    %438 = vmatpush1.bf16.msra.mxu0 0
    %439 = vmatprep.subr.bf16.mxu0 0
    %440 = vmatpush1.bf16.msra.mxu0 0
    %441 = vmatprep.subr.bf16.mxu0 0
    %442 = vmatpush1.bf16.msra.mxu0 0
    %443 = vmatprep.subr.bf16.mxu0 0
    %444 = vmatpush1.bf16.msra.mxu0 0
    %445 = vmatprep.subr.bf16.mxu0 0
    %446 = vmatpush1.bf16.msra.mxu0 0
    %447 = vmatprep.subr.bf16.mxu0 0
    %448 = vmatpush1.bf16.msra.mxu0 0
    %449 = vmatprep.subr.bf16.mxu0 0
    %450 = vmatpush1.bf16.msra.mxu0 0
    %451 = vmatprep.subr.bf16.mxu0 0
    %452 = vmatpush1.bf16.msra.mxu0 0
    %453 = vmatprep.mubr.bf16.mxu0 0
    %454 = vmatmul.mubr.bf16.gmra.mrb[0].mxu0 %v405
    %v455 = vpop.f32.mrb[0].mxu0
    %v456 = vadd.f32 %v371, %v455
    %v457 = vpop.f32.mrb[0].mxu0
    %v458 = vpop.f32.mrb[0].mxu0
    %v459 = vadd.f32 %v371, %v458
    %v460 = vpop.f32.mrb[0].mxu0
    %461 = vmatprep.mubr.bf16.mxu0 0
    %462 = vmatmul.mubr.bf16.gmra.mrb[0].mxu0 %v406
    %v463 = vpop.f32.mrb[0].mxu0
    %v464 = vadd.f32 %v371, %v463
    %v465 = vpop.f32.mrb[0].mxu0
    %v466 = vpop.f32.mrb[0].mxu0
    %v467 = vadd.f32 %v371, %v466
    %v468 = vpop.f32.mrb[0].mxu0
    %469 = vmatprep.mubr.bf16.mxu0 0
    %470 = vmatmul.mubr.bf16.gmra.mrb[0].mxu0 %v407
    %v471 = vpop.f32.mrb[0].mxu0
    %v472 = vadd.f32 %v371, %v471
    %v473 = vpop.f32.mrb[0].mxu0
    %v474 = vpop.f32.mrb[0].mxu0
    %v475 = vadd.f32 %v371, %v474
    %v476 = vpop.f32.mrb[0].mxu0
    %477 = vmatprep.mubr.bf16.mxu0 0
    %478 = vmatmul.mubr.bf16.gmra.mrb[0].mxu0 %v408
    %v479 = vpop.f32.mrb[0].mxu0
    %v480 = vadd.f32 %v371, %v479
    %v481 = vpop.f32.mrb[0].mxu0
    %v482 = vpop.f32.mrb[0].mxu0
    %v483 = vadd.f32 %v371, %v482
    %v484 = vpop.f32.mrb[0].mxu0
    %485 = vmatprep.mubr.bf16.mxu0 0
    %486 = vmatmul.mubr.bf16.gmra.mrb[0].mxu0 %v409
    %v487 = vpop.f32.mrb[0].mxu0
    %v488 = vadd.f32 %v371, %v487
    %v489 = vpop.f32.mrb[0].mxu0
    %v490 = vpop.f32.mrb[0].mxu0
    %v491 = vadd.f32 %v371, %v490
    %v492 = vpop.f32.mrb[0].mxu0
    %493 = vmatprep.mubr.bf16.mxu0 0
    %494 = vmatmul.mubr.bf16.gmra.mrb[0].mxu0 %v410
    %v495 = vpop.f32.mrb[0].mxu0
    %v496 = vadd.f32 %v371, %v495
    %v497 = vpop.f32.mrb[0].mxu0
    %v498 = vpop.f32.mrb[0].mxu0
    %v499 = vadd.f32 %v371, %v498
    %v500 = vpop.f32.mrb[0].mxu0
    %501 = vmatprep.mubr.bf16.mxu0 0
    %502 = vmatmul.mubr.bf16.gmra.mrb[0].mxu0 %v411
    %v503 = vpop.f32.mrb[0].mxu0
    %v504 = vadd.f32 %v371, %v503
    %v505 = vpop.f32.mrb[0].mxu0
    %v506 = vpop.f32.mrb[0].mxu0
    %v507 = vadd.f32 %v371, %v506
    %v508 = vpop.f32.mrb[0].mxu0
    %509 = vmatprep.mubr.bf16.mxu0 0
    %510 = vmatmul.mubr.bf16.gmra.mrb[0].mxu0 %v412
    %v511 = vpop.f32.mrb[0].mxu0
    %v512 = vadd.f32 %v371, %v511
    %v513 = vpop.f32.mrb[0].mxu0
    %v514 = vpop.f32.mrb[0].mxu0
    %v515 = vadd.f32 %v371, %v514
    %v516 = vpop.f32.mrb[0].mxu0
    %517 = vdwg.mxu0
    %v518 = vmax.f32 %v456, 0.0
    %v519 = vmax.f32 %v459, 0.0
    %v520 = vmax.f32 %v464, 0.0
    %v521 = vmax.f32 %v467, 0.0
    %v522 = vmax.f32 %v472, 0.0
    %v523 = vmax.f32 %v475, 0.0
    %v524 = vmax.f32 %v480, 0.0
    %v525 = vmax.f32 %v483, 0.0
    %v526 = vmax.f32 %v488, 0.0
    %v527 = vmax.f32 %v491, 0.0
    %v528 = vmax.f32 %v496, 0.0
    %v529 = vmax.f32 %v499, 0.0
    %v530 = vmax.f32 %v504, 0.0
    %v531 = vmax.f32 %v507, 0.0
    %v532 = vmax.f32 %v512, 0.0
    %v533 = vmax.f32 %v515, 0.0
    %v534 = vld [vmem:[#allocation13] sm:$0x3]
    %535 = vmatprep.subr.mxu0 0.0
    %536 = vmatpush1.msra.mxu0 %v518
    %537 = vmatprep.subr.mxu0 0.0
    %538 = vmatpush1.msra.mxu0 %v519
    %539 = vmatprep.subr.mxu0 0.0
    %540 = vmatpush1.msra.mxu0 %v520
    %541 = vmatprep.subr.mxu0 0.0
    %542 = vmatpush1.msra.mxu0 %v521
    %543 = vmatprep.subr.mxu0 0.0
    %544 = vmatpush1.msra.mxu0 %v522
    %545 = vmatprep.subr.mxu0 0.0
    %546 = vmatpush1.msra.mxu0 %v523
    %547 = vmatprep.subr.mxu0 0.0
    %548 = vmatpush1.msra.mxu0 %v524
    %549 = vmatprep.subr.mxu0 0.0
    %550 = vmatpush1.msra.mxu0 %v525
    %551 = vmatprep.subr.mxu0 0.0
    %552 = vmatpush1.msra.mxu0 %v526
    %553 = vmatprep.subr.mxu0 0.0
    %554 = vmatpush1.msra.mxu0 %v527
    %555 = vmatprep.subr.mxu0 0.0
    %556 = vmatpush1.msra.mxu0 %v528
    %557 = vmatprep.subr.mxu0 0.0
    %558 = vmatpush1.msra.mxu0 %v529
    %559 = vmatprep.subr.mxu0 0.0
    %560 = vmatpush1.msra.mxu0 %v530
    %561 = vmatprep.subr.mxu0 0.0
    %562 = vmatpush1.msra.mxu0 %v531
    %563 = vmatprep.subr.mxu0 0.0
    %564 = vmatpush1.msra.mxu0 %v532
    %565 = vmatprep.subr.mxu0 0.0
    %566 = vmatpush1.msra.mxu0 %v533
    %567 = vmatprep.subr.mxu0 0.0
    %568 = vmatpush1.msra.mxu0 0.0
    %569 = vmatprep.subr.mxu0 0.0
    %570 = vmatpush1.msra.mxu0 0.0
    %571 = vmatprep.subr.mxu0 0.0
    %572 = vmatpush1.msra.mxu0 0.0
    %573 = vmatprep.subr.mxu0 0.0
    %574 = vmatpush1.msra.mxu0 0.0
    %575 = vmatprep.subr.mxu0 0.0
    %576 = vmatpush1.msra.mxu0 0.0
    %577 = vmatprep.subr.mxu0 0.0
    %578 = vmatpush1.msra.mxu0 0.0
    %579 = vmatprep.subr.mxu0 0.0
    %580 = vmatpush1.msra.mxu0 0.0
    %581 = vmatprep.subr.mxu0 0.0
    %582 = vmatpush1.msra.mxu0 0.0
    %583 = vmatprep.subr.mxu0 0.0
    %584 = vmatpush1.msra.mxu0 0.0
    %585 = vmatprep.subr.mxu0 0.0
    %586 = vmatpush1.msra.mxu0 0.0
    %587 = vmatprep.subr.mxu0 0.0
    %588 = vmatpush1.msra.mxu0 0.0
    %589 = vmatprep.subr.mxu0 0.0
    %590 = vmatpush1.msra.mxu0 0.0
    %591 = vmatprep.subr.mxu0 0.0
    %592 = vmatpush1.msra.mxu0 0.0
    %593 = vmatprep.subr.mxu0 0.0
    %594 = vmatpush1.msra.mxu0 0.0
    %595 = vmatprep.subr.mxu0 0.0
    %596 = vmatpush1.msra.mxu0 0.0
    %597 = vmatprep.subr.mxu0 0.0
    %598 = vmatpush1.msra.mxu0 0.0
    %599 = vmatprep.mubr.f32.mxu0 0.0
    %600 = vmatmul.mubr.f32.gmra.mrb[0].mxu0 %v534
    %v601 = vpop.f32.mrb[0].mxu0
    %v602 = vadd.f32 0.0, %v601
    %v603 = vpop.f32.mrb[0].mxu0
    %604 = vdwg.mxu0
    %v605 = vld [vmem:[#allocation10] sm:$0xff]
    %v606 = vld [vmem:[#allocation10 + $0x8] sm:$0xff]
    %v607 = vld [vmem:[#allocation10 + $0x10] sm:$0xff]
    %v608 = vld [vmem:[#allocation10 + $0x18] sm:$0xff]
    %v609 = vld [vmem:[#allocation10 + $0x20] sm:$0xff]
    %v610 = vld [vmem:[#allocation10 + $0x28] sm:$0xff]
    %v611 = vld [vmem:[#allocation10 + $0x30] sm:$0xff]
    %v612 = vld [vmem:[#allocation10 + $0x38] sm:$0xff]
    %v613 = vld [vmem:[#allocation10 + $0x40] sm:$0xff]
    %v614 = vld [vmem:[#allocation10 + $0x48] sm:$0xff]
    %v615 = vld [vmem:[#allocation10 + $0x50] sm:$0xff]
    %v616 = vld [vmem:[#allocation10 + $0x58] sm:$0xff]
    %v617 = vld [vmem:[#allocation10 + $0x60] sm:$0xff]
    %v618 = vld [vmem:[#allocation10 + $0x68] sm:$0xff]
    %v619 = vld [vmem:[#allocation10 + $0x70] sm:$0xff]
    %v620 = vld [vmem:[#allocation10 + $0x78] sm:$0xff]
    %v621 = vld [vmem:[#allocation11] sm:$0x1]
    %v623 = vlaneseq
    %v624 = vshrl.u32 %v623, 7
    %v625 = vsub.s32 0, %v624
    %v626 = vrot.slane %v621, %v625
    %628 = vmatprep.subr.mxu0 0.0
    %629 = vmatpush1.msra.mxu0 %v605
    %630 = vmatprep.subr.mxu0 0.0
    %631 = vmatpush1.msra.mxu0 %v606
    %632 = vmatprep.subr.mxu0 0.0
    %633 = vmatpush1.msra.mxu0 %v607
    %634 = vmatprep.subr.mxu0 0.0
    %635 = vmatpush1.msra.mxu0 %v608
    %636 = vmatprep.subr.mxu0 0.0
    %637 = vmatpush1.msra.mxu0 %v609
    %638 = vmatprep.subr.mxu0 0.0
    %639 = vmatpush1.msra.mxu0 %v610
    %640 = vmatprep.subr.mxu0 0.0
    %641 = vmatpush1.msra.mxu0 %v611
    %642 = vmatprep.subr.mxu0 0.0
    %643 = vmatpush1.msra.mxu0 %v612
    %644 = vmatprep.subr.mxu0 0.0
    %645 = vmatpush1.msra.mxu0 %v613
    %646 = vmatprep.subr.mxu0 0.0
    %647 = vmatpush1.msra.mxu0 %v614
    %648 = vmatprep.subr.mxu0 0.0
    %649 = vmatpush1.msra.mxu0 %v615
    %650 = vmatprep.subr.mxu0 0.0
    %651 = vmatpush1.msra.mxu0 %v616
    %652 = vmatprep.subr.mxu0 0.0
    %653 = vmatpush1.msra.mxu0 %v617
    %654 = vmatprep.subr.mxu0 0.0
    %655 = vmatpush1.msra.mxu0 %v618
    %656 = vmatprep.subr.mxu0 0.0
    %657 = vmatpush1.msra.mxu0 %v619
    %658 = vmatprep.subr.mxu0 0.0
    %659 = vmatpush1.msra.mxu0 %v620
    %660 = vmatprep.subr.mxu0 0.0
    %661 = vmatpush1.msra.mxu0 0.0
    %662 = vmatprep.subr.mxu0 0.0
    %663 = vmatpush1.msra.mxu0 0.0
    %664 = vmatprep.subr.mxu0 0.0
    %665 = vmatpush1.msra.mxu0 0.0
    %666 = vmatprep.subr.mxu0 0.0
    %667 = vmatpush1.msra.mxu0 0.0
    %668 = vmatprep.subr.mxu0 0.0
    %669 = vmatpush1.msra.mxu0 0.0
    %670 = vmatprep.subr.mxu0 0.0
    %671 = vmatpush1.msra.mxu0 0.0
    %672 = vmatprep.subr.mxu0 0.0
    %673 = vmatpush1.msra.mxu0 0.0
    %674 = vmatprep.subr.mxu0 0.0
    %675 = vmatpush1.msra.mxu0 0.0
    %676 = vmatprep.subr.mxu0 0.0
    %677 = vmatpush1.msra.mxu0 0.0
    %678 = vmatprep.subr.mxu0 0.0
    %679 = vmatpush1.msra.mxu0 0.0
    %680 = vmatprep.subr.mxu0 0.0
    %681 = vmatpush1.msra.mxu0 0.0
    %682 = vmatprep.subr.mxu0 0.0
    %683 = vmatpush1.msra.mxu0 0.0
    %684 = vmatprep.subr.mxu0 0.0
    %685 = vmatpush1.msra.mxu0 0.0
    %686 = vmatprep.subr.mxu0 0.0
    %687 = vmatpush1.msra.mxu0 0.0
    %688 = vmatprep.subr.mxu0 0.0
    %689 = vmatpush1.msra.mxu0 0.0
    %690 = vmatprep.subr.mxu0 0.0
    %691 = vmatpush1.msra.mxu0 0.0
    %692 = vmatprep.mubr.f32.mxu0 0.0
    %693 = vmatmul.mubr.f32.gmra.mrb[0].mxu0 %v602
    %v694 = vpop.f32.mrb[0].mxu0
    %v695 = vadd.f32 %v626, %v694
    %v696 = vpop.f32.mrb[0].mxu0
    %697 = vdwg.mxu0
    %698 = vst [vmem:[#allocation14] sm:$0x3] %v695
    // Predicated region
    $region58: #{gcn_forward.1} parent=1 // pred_check
      _
    $region59: #{gcn_forward.1} parent=1 // pred_check_branch
      %700 = sbr.rel (0) target = $region61
    $region60: #{gcn_forward.1} parent=1 // pred_region
      %s702 = ssub.s32 32, 32
      %703 = vsyncadd [#allocation4], %s702
      %s705 = sshll.u32 [#allocation14], 4
      %s706 = int_to_ptr.vmem [resolvable:$true] %s705
      %708 = dma.vmem_to_hbm [thread:$0]  %s706, 32, %s7, [#allocation4]
    $region61: #{gcn_forward.1} parent=1 // pred_fallthru
      _
    // Predicated region
    $region62: #{gcn_forward.1} parent=1 // pred_check
      _
    $region63: #{gcn_forward.1} parent=1 // pred_check_branch
      %710 = sbr.rel (0) target = $region65
    $region64: #{gcn_forward.1} parent=1 // pred_region
      %711 = dma.done [#allocation4], 32
    $region65: #{gcn_forward.1} parent=1 // pred_fallthru
      _
    %712 = vsyncpa [#allocation3], 1
    %713 = vsyncpa [#allocation6], 1
    %714 = vsyncpa [#allocation9], 1
    %715 = vsyncpa [#allocation12], 1
    %716 = vsyncpa [#allocation4], 1

</llo_original>
